<compile_context>
chip_gen: v5e
topology: v5e:2x2
jax: 0.10.0
libtpu: 0.0.40
codegen_flags: <defaults>
</compile_context>

<pallas_src>
import jax
import jax.numpy as jnp
from jax import lax
from jax.experimental import pallas as pl
from jax.experimental.pallas import tpu as pltpu


def _round_up(v, m):
    return ((v + m - 1) // m) * m


def _patch_prompt_slab_kernel(row_blk_ref, x_ref, prompt_ref, o_ref):
    # row_blk_ref : SMEM int32[1]          (consumed by the index_maps only)
    # x_ref       : (B_BLK, C, 8, ISIZE)   8-row block of the image batch (slab)
    # prompt_ref  : (1,     C, SLAB, ISIZE) shifted prompt slab (resident in VMEM)
    # o_ref       : (B_BLK, C, 8, ISIZE)   output block (HBM buffer aliases x)
    del row_blk_ref
    r = pl.program_id(1)
    rows = pl.ds(pl.multiple_of(r * 8, 8), 8)          # sublane-aligned slice
    # single unmasked, lane-dense store; prompt broadcasts over the batch dim
    o_ref[...] = x_ref[...] + prompt_ref[:, :, rows, :]


@jax.jit
def random_patch_prompter_forward(x, patch, offsets):
    """out = x + prompt, where prompt is zero except `patch` at rows x0:, cols y0:.

    offsets: int32[2] = (x0, y0), drawn on the host like np.random.choice.
    Traced -> every random offset reuses the same compiled kernel.
    """
    B, C, ISIZE, _ = x.shape
    psize = patch.shape[-1]
    assert patch.shape == (1, C, psize, psize)
    assert ISIZE % 8 == 0, "image size must be sublane (8) aligned"

    # 8-row-aligned slab that always contains the patch window.
    SLAB = min(_round_up(psize + 7, 8), ISIZE)
    B_BLK = B if B <= 8 else 8
    assert B % B_BLK == 0

    x0 = offsets[0].astype(jnp.int32)
    y0 = offsets[1].astype(jnp.int32)
    # Round the slab start down to a multiple of 8, clamped so it stays in range.
    row_start = jnp.minimum((x0 // 8) * 8, ISIZE - SLAB)
    row_blk0 = jnp.reshape(row_start // 8, (1,))              # scalar prefetch

    # Shifted prompt slab: zeros with the patch placed at (x0 - row_start, y0).
    zero = jnp.zeros((), jnp.int32)
    prompt_slab = jnp.zeros((1, C, SLAB, ISIZE), x.dtype)
    prompt_slab = lax.dynamic_update_slice(
        prompt_slab, patch.astype(x.dtype), (zero, zero, x0 - row_start, y0))

    grid = (B // B_BLK, SLAB // 8)
    itemsize = jnp.dtype(x.dtype).itemsize
    slab_bytes = B * C * SLAB * ISIZE * itemsize

    # NOTE: callers that no longer need `x` should donate it at their jit
    # boundary; XLA then elides the protective copy and total HBM traffic for
    # this op is slab-only.  Without donation x stays intact (PyTorch semantics).
    return pl.pallas_call(
        _patch_prompt_slab_kernel,
        out_shape=jax.ShapeDtypeStruct(x.shape, x.dtype),
        grid_spec=pltpu.PrefetchScalarGridSpec(
            num_scalar_prefetch=1,
            grid=grid,
            in_specs=[
                # image: 8-row blocks starting at the prefetched slab row block
                pl.BlockSpec((B_BLK, C, 8, ISIZE),
                             lambda b, r, row_blk: (b, 0, row_blk[0] + r, 0)),
                # prompt slab: constant index_map -> DMA'd once, stays resident
                pl.BlockSpec((1, C, SLAB, ISIZE),
                             lambda b, r, row_blk: (0, 0, 0, 0)),
            ],
            out_specs=pl.BlockSpec((B_BLK, C, 8, ISIZE),
                                   lambda b, r, row_blk: (b, 0, row_blk[0] + r, 0)),
        ),
        # Output shares x's HBM buffer: rows outside the slab are never touched.
        # Operand order is (row_blk0, x, prompt_slab) -> x is index 1.
        input_output_aliases={1: 0},
        compiler_params=pltpu.CompilerParams(
            dimension_semantics=("parallel", "arbitrary")),
        cost_estimate=pl.CostEstimate(
            flops=B * C * SLAB * ISIZE,
            transcendentals=0,
            bytes_accessed=2 * slab_bytes + C * SLAB * ISIZE * itemsize),
    )(row_blk0, x, prompt_slab)


if __name__ == "__main__":
    # small, module-consistent example shapes (real module: C=3, ISIZE=224)
    B, C, ISIZE, PSIZE = 2, 3, 64, 16
    DTYPE = jnp.float32

    key = jax.random.PRNGKey(0)
    k_x, k_patch, k_off = jax.random.split(key, 3)

    x = jax.random.normal(k_x, (B, C, ISIZE, ISIZE), dtype=DTYPE)
    patch = jax.random.normal(k_patch, (1, C, PSIZE, PSIZE), dtype=DTYPE)

    def reference(x, patch, offs):
        prompt = jnp.zeros((1, C, ISIZE, ISIZE), DTYPE)
        prompt = lax.dynamic_update_slice(
            prompt, patch,
            (jnp.int32(0), jnp.int32(0), offs[0], offs[1]))
        return x + prompt

    # np.random.choice(isize - psize) draws from [0, isize - psize).
    offs1 = jax.random.randint(k_off, (2,), 0, ISIZE - PSIZE, dtype=jnp.int32)
    # second, deliberately sublane-unaligned offset: exercises the
    # single-compile / traced-offset path and the slab clamping.
    offs2 = jnp.array([ISIZE - PSIZE - 1, 5], dtype=jnp.int32)

    for offs in (offs1, offs2):
        ref = reference(x, patch, offs)            # computed before the call
        out = jax.block_until_ready(
            random_patch_prompter_forward(x, patch, offs))
        assert out.shape == (B, C, ISIZE, ISIZE)
        assert out.dtype == DTYPE
        assert jnp.allclose(out, ref), "Pallas output mismatch vs reference"

    print("KERNEL_OK")
</pallas_src>

<mosaic_0001>
module attributes {stable_mosaic.version = 11 : i64} {
  func.func @_patch_prompt_slab_kernel(%arg0: i32, %arg1: i32, %arg2: memref<1xi32, #tpu.memory_space<smem>>, %arg3: memref<2x3x8x64xf32, #tpu.memory_space<vmem>>, %arg4: memref<1x3x24x64xf32, #tpu.memory_space<vmem>>, %arg5: memref<2x3x8x64xf32, #tpu.memory_space<vmem>>) attributes {dimension_semantics = [#tpu.dimension_semantics<parallel>, #tpu.dimension_semantics<arbitrary>], iteration_bounds = array<i64: 1, 3>, scalar_prefetch = 1 : i64, scratch_operands = 0 : i64, tpu.core_type = #tpu.core_type<tc>, window_params = [{transform_indices = @transform_0, window_bounds = array<i64: 2, 3, 8, 64>}, {pipeline_mode = #tpu.pipeline_mode<synchronous>, transform_indices = @transform_1, window_bounds = array<i64: 1, 3, 24, 64>}, {transform_indices = @transform_2, window_bounds = array<i64: 2, 3, 8, 64>}]} {
    %c8_i32 = arith.constant 8 : i32
    %0 = arith.muli %arg1, %c8_i32 : i32
    %1 = tpu.assume_multiple %0, 8 : i32
    %c0 = arith.constant 0 : index
    %c0_0 = arith.constant 0 : index
    %c0_1 = arith.constant 0 : index
    %c0_2 = arith.constant 0 : index
    %2 = vector.load %arg3[%c0, %c0_0, %c0_1, %c0_2] : memref<2x3x8x64xf32, #tpu.memory_space<vmem>>, vector<2x3x8x64xf32>
    %c0_3 = arith.constant 0 : index
    %c0_4 = arith.constant 0 : index
    %3 = arith.index_cast %1 : i32 to index
    %c0_5 = arith.constant 0 : index
    %4 = vector.load %arg4[%c0_3, %c0_4, %3, %c0_5] : memref<1x3x24x64xf32, #tpu.memory_space<vmem>>, vector<1x3x8x64xf32>
    %5 = vector.broadcast %4 : vector<1x3x8x64xf32> to vector<2x3x8x64xf32>
    %6 = arith.addf %2, %5 : vector<2x3x8x64xf32>
    %c0_6 = arith.constant 0 : index
    %c0_7 = arith.constant 0 : index
    %c0_8 = arith.constant 0 : index
    %c0_9 = arith.constant 0 : index
    %7 = vector.load %arg5[%c0_6, %c0_7, %c0_8, %c0_9] : memref<2x3x8x64xf32, #tpu.memory_space<vmem>>, vector<2x3x8x64xf32>
    tpu.vector_store %arg5[%c0_6, %c0_7, %c0_8, %c0_9], %6 {strides = array<i32>} : memref<2x3x8x64xf32, #tpu.memory_space<vmem>>, vector<2x3x8x64xf32>,
    return
  }
  func.func @transform_0(%arg0: i32, %arg1: i32, %arg2: memref<1xi32, #tpu.memory_space<smem>>) -> (i32, i32, i32, i32) {
    %c0 = arith.constant 0 : index
    %0 = memref.load %arg2[%c0] : memref<1xi32, #tpu.memory_space<smem>>
    %1 = arith.addi %0, %arg1 : i32
    %c0_i32 = arith.constant 0 : i32
    %c0_i32_0 = arith.constant 0 : i32
    %c0_i32_1 = arith.constant 0 : i32
    return %arg0, %c0_i32, %1, %c0_i32_0 : i32, i32, i32, i32
  }
  func.func @transform_1(%arg0: i32, %arg1: i32, %arg2: memref<1xi32, #tpu.memory_space<smem>>) -> (i32, i32, i32, i32) {
    %c0_i32 = arith.constant 0 : i32
    %c0_i32_0 = arith.constant 0 : i32
    %c0_i32_1 = arith.constant 0 : i32
    %c0_i32_2 = arith.constant 0 : i32
    %c0_i32_3 = arith.constant 0 : i32
    return %c0_i32, %c0_i32_0, %c0_i32_1, %c0_i32_2 : i32, i32, i32, i32
  }
  func.func @transform_2(%arg0: i32, %arg1: i32, %arg2: memref<1xi32, #tpu.memory_space<smem>>) -> (i32, i32, i32, i32) {
    %c0 = arith.constant 0 : index
    %0 = memref.load %arg2[%c0] : memref<1xi32, #tpu.memory_space<smem>>
    %1 = arith.addi %0, %arg1 : i32
    %c0_i32 = arith.constant 0 : i32
    %c0_i32_0 = arith.constant 0 : i32
    %c0_i32_1 = arith.constant 0 : i32
    return %arg0, %c0_i32, %1, %c0_i32_0 : i32, i32, i32, i32
  }
}

</mosaic_0001>

<llo_original>
// kernel: random_patch_prompter_forward.1
$region0: #{random_patch_prompter_forward.1}
  #allocation0 [shape = 'u32[]', space=smem, size = 0x4, offset = 0x4, fixed_abs, tag = 'smem constant byte address 0x4 - core index']
  #allocation1 [shape = 'u32[72,128]{1,0:T(1,128)}', space=vmem, size = 0x9000, scoped, tag = 'internal scratch']
  #allocation2 [shape = 's32[1]{0}', space=sflag, size = 0x4, scoped, tag = 'scoped memory for random_patch_prompter_forward.1']
  #allocation3 [shape = 's32[1]{0:T(128)S(6)}', space=smem, size = 0x200, scoped, tag = 'prefetched SMEM operand 0']
  %s0 = inlined_call_operand.<no memory space> [shape: s32[1], index: 0, kind: input, shape index: {}]
  %s1 = inlined_call_operand.hbm [shape: f32[2,3,64,64], index: 1, kind: input, shape index: {}, may-alias: {1,3}]
  %s2 = inlined_call_operand.vmem [shape: f32[1,3,24,64], index: 2, kind: input, shape index: {}]
  %s3 = inlined_call_operand.hbm [shape: f32[2,3,64,64], index: 3, kind: output, shape index: {}, may-alias: {1,3}]
  %s4 = sld [smem:[#allocation0]]
  $region45: #{random_patch_prompter_forward.1} parent=0
    _
  %s6 = ssub.s32 1, %s4
  %s7 = scalar_select 0, %s6, %s4
  %8 = sst [smem:[#allocation3]] %s0
  $region1: #{random_patch_prompter_forward.1} parent=0
    #allocation4 [shape = 'u8[49152]{0}', space=vmem, size = 0xc000, scoped, tag = 'input window, operand 1']
    #allocation5 [shape = 's32[2]{0}', space=sflag, size = 0x8, scoped, tag = 'scoped memory for random_patch_prompter_forward.1']
    #allocation6 [shape = 's32[2]{0}', space=sflag, size = 0x8, scoped, tag = 'scoped memory for random_patch_prompter_forward.1']
    #allocation7 [shape = 'u8[49152]{0}', space=vmem, size = 0xc000, scoped, tag = 'output window, operand 0']
    %9 = vsyncpa [#allocation5], 0
    %s10 = scalar_lea.sflag [#allocation5], 1
    %11 = vsyncpa %s10, 0
    %12 = vsyncpa [#allocation6], 0
    %s13 = scalar_lea.sflag [#allocation6], 1
    %14 = vsyncpa %s13, 0
    loop: start=0, step=1, limit=5
    $region2: #{random_patch_prompter_forward.1} parent=1 // loop_pre_header
      _
    $region3: #{random_patch_prompter_forward.1} parent=1 // loop_header
      %s16 = sphi 0, %s20
      %p17 = scmp.ge.s32.totalorder %s16, 5
      %s23 = sphi 0, %s35
      %s24 = sphi 0, %s31
      %s25 = sphi 0, %s23
      %s26 = sphi 0, %s24
      %s27 = sphi 0, %s25
      %s28 = sphi 0, %s26
      %s44 = sphi 0, %s46
      %s47 = sphi 0, %s44
      %s48 = sphi 0, %s47
      %s64 = sphi 0, %s48
      %s68 = sphi 0, %s68
      %s70 = sphi 0, %s68
      %s71 = sphi 0, %s70
      %s85 = sphi 0, %s71
      %s97 = sphi 0, %s99
      %s100 = sphi 0, %s97
      %s101 = sphi 0, %s100
      %s117 = sphi 0, %s101
    $region4: #{random_patch_prompter_forward.1} parent=1 // loop_header_branch
      %19 = sbr.rel (%p17) target = $region8
    $region5: #{random_patch_prompter_forward.1} parent=1 // loop_body
      %s21 = ssub.s32 %s16, 1
      %s22 = ssub.s32 %s16, 2
      %s29 = sadd.s32 1, %s24
      %p30 = scmp.ge.s32.totalorder %s29, 3
      %s31 = scalar_select %p30, 0, %s29
      %s32 = sadd.s32 1, %s23
      %s33 = scalar_select %p30, %s32, %s23
      %p34 = scmp.ge.s32.totalorder %s33, 1
      %s35 = scalar_select %p34, 0, %s33
      %s36 = sld [smem:[#allocation3]]
      %s37 = sadd.s32 %s36, %s24
      %s38 = sld [smem:[#allocation3]]
      %s39 = sadd.s32 %s38, %s31
      %s40 = ssub.s32 %s23, %s35
      %s41 = ssub.s32 %s37, %s39
      %s42 = sor.u32 %s40, %s41
      %p43 = scmp.eq.s32.totalorder %s42, 0
      %s45 = sadd.s32 %s44, 1
      %s46 = scalar_select %p43, %s44, %s45
      %p49 = pneg %p43
      %p50 = scmp.eq.s32.totalorder %s16, 2
      %p51 = por %p49, %p50
      %p52 = scmp.ne.s32.totalorder %s44, %s47
      %p53 = scmp.eq.s32.totalorder %s16, 0
      %p54 = por %p52, %p53
      %p55 = scmp.ne.s32.totalorder %s44, %s47
      %p56 = scmp.eq.s32.totalorder %s21, 2
      %p57 = por %p55, %p56
      %p58 = scmp.ne.s32.totalorder %s47, %s48
      %p59 = scmp.eq.s32.totalorder %s21, 0
      %p60 = por %p58, %p59
      %p61 = scmp.ne.s32.totalorder %s47, %s48
      %p62 = scmp.eq.s32.totalorder %s22, 2
      %p63 = por %p61, %p62
      %p65 = scmp.ne.s32.totalorder %s48, %s64
      %p66 = scmp.eq.s32.totalorder %s22, 0
      %p67 = por %p65, %p66
      %s69 = sadd.s32 %s68, 1
      %p72 = scmp.eq.s32.totalorder %s16, 2
      %p73 = scmp.ne.s32.totalorder %s68, %s70
      %p74 = scmp.eq.s32.totalorder %s16, 0
      %p75 = por %p73, %p74
      %p76 = scmp.ne.s32.totalorder %s68, %s70
      %p77 = scmp.eq.s32.totalorder %s21, 2
      %p78 = por %p76, %p77
      %p79 = scmp.ne.s32.totalorder %s70, %s71
      %p80 = scmp.eq.s32.totalorder %s21, 0
      %p81 = por %p79, %p80
      %p82 = scmp.ne.s32.totalorder %s70, %s71
      %p83 = scmp.eq.s32.totalorder %s22, 2
      %p84 = por %p82, %p83
      %p86 = scmp.ne.s32.totalorder %s71, %s85
      %p87 = scmp.eq.s32.totalorder %s22, 0
      %p88 = por %p86, %p87
      %s89 = sld [smem:[#allocation3]]
      %s90 = sadd.s32 %s89, %s24
      %s91 = sld [smem:[#allocation3]]
      %s92 = sadd.s32 %s91, %s31
      %s93 = ssub.s32 %s23, %s35
      %s94 = ssub.s32 %s90, %s92
      %s95 = sor.u32 %s93, %s94
      %p96 = scmp.eq.s32.totalorder %s95, 0
      %s98 = sadd.s32 %s97, 1
      %s99 = scalar_select %p96, %s97, %s98
      %p102 = pneg %p96
      %p103 = scmp.eq.s32.totalorder %s16, 2
      %p104 = por %p102, %p103
      %p105 = scmp.ne.s32.totalorder %s97, %s100
      %p106 = scmp.eq.s32.totalorder %s16, 0
      %p107 = por %p105, %p106
      %p108 = scmp.ne.s32.totalorder %s97, %s100
      %p109 = scmp.eq.s32.totalorder %s21, 2
      %p110 = por %p108, %p109
      %p111 = scmp.ne.s32.totalorder %s100, %s101
      %p112 = scmp.eq.s32.totalorder %s21, 0
      %p113 = por %p111, %p112
      %p114 = scmp.ne.s32.totalorder %s100, %s101
      %p115 = scmp.eq.s32.totalorder %s22, 2
      %p116 = por %p114, %p115
      %p118 = scmp.ne.s32.totalorder %s101, %s117
      %p119 = scmp.eq.s32.totalorder %s22, 0
      %p120 = por %p118, %p119
      %p121 = scmp.le.s32.totalorder 1, %s16
      %p122 = scmp.lt.s32.totalorder %s16, 4
      %p123 = pnand %p121, %p122
      %p124 = pneg %p123
      // Predicated region
      $region9: #{random_patch_prompter_forward.1} parent=5 // pred_check
        _
      $region10: #{random_patch_prompter_forward.1} parent=5 // pred_check_branch
        %126 = sbr.rel (%p123) target = $region12
      $region11: #{random_patch_prompter_forward.1} parent=5 // pred_region
        %s127 = ssub.s32 %s16, 1
        // Predicated region
        $region13: #{random_patch_prompter_forward.1} parent=11 // pred_check
          %p128 = pneg %p81
        $region14: #{random_patch_prompter_forward.1} parent=11 // pred_check_branch
          %130 = sbr.rel (%p128) target = $region16
        $region15: #{random_patch_prompter_forward.1} parent=11 // pred_region
          _
        $region16: #{random_patch_prompter_forward.1} parent=11 // pred_fallthru
          _
      $region12: #{random_patch_prompter_forward.1} parent=5 // pred_fallthru
        _
      %p131 = scmp.lt.s32.totalorder %s16, 3
      // Predicated region
      $region17: #{random_patch_prompter_forward.1} parent=5 // pred_check
        %p132 = pneg %p131
      $region18: #{random_patch_prompter_forward.1} parent=5 // pred_check_branch
        %134 = sbr.rel (%p132) target = $region20
      $region19: #{random_patch_prompter_forward.1} parent=5 // pred_region
        // Predicated region
        $region21: #{random_patch_prompter_forward.1} parent=19 // pred_check
          %p135 = pneg %p54
        $region22: #{random_patch_prompter_forward.1} parent=19 // pred_check_branch
          %137 = sbr.rel (%p135) target = $region24
        $region23: #{random_patch_prompter_forward.1} parent=19 // pred_region
          %s138 = sand.u32 %s44, 1
          %s139 = scalar_lea.sflag [#allocation5], %s138
          %s140 = sand.u32 %s44, 1
          %s141 = smul.addr %s140, 48
          %s142 = scalar_lea.vmem [#allocation4], %s141
          %s143 = sld [smem:[#allocation3]]
          %s144 = sadd.s32 %s143, %s24
          %s145 = smul.u32 2, %s23
          %147 = vsyncadd %s139, 0
          %s148 = smul.addr %s145, 24
          %s149 = sadd.s32 %s144, %s148
          %s150 = smul.addr %s149, 8
          %s151 = scalar_lea.hbm %s1, %s150
          %s152 = sshll.u32 %s151, 4
          %s153 = int_to_ptr.hbm [resolvable:$true] %s152
          %s154 = sshll.u32 %s142, 4
          %s155 = int_to_ptr.vmem [resolvable:$true] %s154
          %160 = dma.hbm_to_vmem [thread:$0]  %s153, 768, %s155, %s139, 1024, 128, 8
        $region24: #{random_patch_prompter_forward.1} parent=19 // pred_fallthru
          _
      $region20: #{random_patch_prompter_forward.1} parent=5 // pred_fallthru
        _
      %p161 = scmp.le.s32.totalorder 1, %s16
      %p162 = scmp.lt.s32.totalorder %s16, 4
      %p163 = pnand %p161, %p162
      %p164 = pneg %p163
      // Predicated region
      $region25: #{random_patch_prompter_forward.1} parent=5 // pred_check
        _
      $region26: #{random_patch_prompter_forward.1} parent=5 // pred_check_branch
        %166 = sbr.rel (%p163) target = $region28
      $region27: #{random_patch_prompter_forward.1} parent=5 // pred_region
        %s167 = ssub.s32 %s16, 1
        %s168 = sand.u32 %s47, 1
        %s169 = scalar_lea.sflag [#allocation5], %s168
        %s170 = sand.u32 %s47, 1
        %s171 = smul.addr %s170, 48
        %s172 = scalar_lea.vmem [#allocation4], %s171
        // Predicated region
        $region29: #{random_patch_prompter_forward.1} parent=27 // pred_check
          %p173 = pneg %p60
        $region30: #{random_patch_prompter_forward.1} parent=27 // pred_check_branch
          %175 = sbr.rel (%p173) target = $region32
        $region31: #{random_patch_prompter_forward.1} parent=27 // pred_region
          %177 = dma.done %s169, 768
        $region32: #{random_patch_prompter_forward.1} parent=27 // pred_fallthru
          _
        %s178 = sand.u32 %s47, 1
        %s179 = scalar_lea.sflag [#allocation5], %s178
        %s180 = sand.u32 %s47, 1
        %s181 = smul.addr %s180, 48
        %s182 = scalar_lea.vmem [#allocation4], %s181
        %p183 = pneg %p60
        %p184 = pneg %p57
        %p185 = pneg %p81
        %p186 = pneg %p78
        %p187 = pneg %p113
        %p188 = pneg %p110
        %s189 = sand.u32 %s100, 1
        %s190 = scalar_lea.sflag [#allocation6], %s189
        %s191 = sand.u32 %s100, 1
        %s192 = smul.addr %s191, 48
        %s193 = scalar_lea.vmem [#allocation7], %s192
        %s194 = sld [smem:[#allocation3]]
        %s195 = sadd.s32 %s194, %s26
        %s196 = smul.u32 2, %s25
        %s197 = sld [smem:[#allocation3]]
        %s198 = sadd.s32 %s197, %s26
        %s199 = smul.u32 2, %s25
        %s200 = smul.u32 %s26, 8
        %v201 = vld [vmem:[%s172] sm:$0xff]
        %v202 = vld [vmem:[%s172 + $0x8] sm:$0xff]
        %v203 = vld [vmem:[%s172 + $0x10] sm:$0xff]
        %v204 = vld [vmem:[%s172 + $0x18] sm:$0xff]
        %v205 = vld [vmem:[%s172 + $0x20] sm:$0xff]
        %v206 = vld [vmem:[%s172 + $0x28] sm:$0xff]
        %s207 = scalar_lea.vmem %s2, %s200
        %v208 = vld [vmem:[%s207] sm:$0xff]
        %v209 = vld [vmem:[%s207 + $0x18] sm:$0xff]
        %v210 = vld [vmem:[%s207 + $0x30] sm:$0xff]
        %v211 = vadd.f32 %v201, %v208
        %v212 = vadd.f32 %v202, %v209
        %v213 = vadd.f32 %v203, %v210
        %v214 = vadd.f32 %v204, %v208
        %v215 = vadd.f32 %v205, %v209
        %v216 = vadd.f32 %v206, %v210
        %vm217 = vcmask 523264
        %218 = vst.msk [vmem:[%s193] sm:$0xff] %vm217, %v211
        %219 = vst.msk [vmem:[%s193 + $0x8] sm:$0xff] %vm217, %v212
        %220 = vst.msk [vmem:[%s193 + $0x10] sm:$0xff] %vm217, %v213
        %221 = vst.msk [vmem:[%s193 + $0x18] sm:$0xff] %vm217, %v214
        %222 = vst.msk [vmem:[%s193 + $0x20] sm:$0xff] %vm217, %v215
        %223 = vst.msk [vmem:[%s193 + $0x28] sm:$0xff] %vm217, %v216
        %s224 = sand.u32 %s100, 1
        %s225 = scalar_lea.sflag [#allocation6], %s224
        %s226 = sand.u32 %s100, 1
        %s227 = smul.addr %s226, 48
        %s228 = scalar_lea.vmem [#allocation7], %s227
        // Predicated region
        $region33: #{random_patch_prompter_forward.1} parent=27 // pred_check
          %p229 = pneg %p110
        $region34: #{random_patch_prompter_forward.1} parent=27 // pred_check_branch
          %231 = sbr.rel (%p229) target = $region36
        $region35: #{random_patch_prompter_forward.1} parent=27 // pred_region
          %s232 = sld [smem:[#allocation3]]
          %s233 = sadd.s32 %s232, %s26
          %s234 = smul.u32 2, %s25
          %236 = vsyncadd %s225, 0
          %s237 = smul.addr %s234, 24
          %s238 = sadd.s32 %s233, %s237
          %s239 = smul.addr %s238, 8
          %s240 = scalar_lea.hbm %s3, %s239
          %s241 = sshll.u32 %s228, 4
          %s242 = int_to_ptr.vmem [resolvable:$true] %s241
          %s243 = sshll.u32 %s240, 4
          %s244 = int_to_ptr.hbm [resolvable:$true] %s243
          %249 = dma.vmem_to_hbm [thread:$0]  %s242, 768, %s244, %s225, 128, 1024, 8
        $region36: #{random_patch_prompter_forward.1} parent=27 // pred_fallthru
          _
      $region28: #{random_patch_prompter_forward.1} parent=5 // pred_fallthru
        _
      %p250 = scmp.le.s32.totalorder 2, %s16
      // Predicated region
      $region37: #{random_patch_prompter_forward.1} parent=5 // pred_check
        %p251 = pneg %p250
      $region38: #{random_patch_prompter_forward.1} parent=5 // pred_check_branch
        %253 = sbr.rel (%p251) target = $region40
      $region39: #{random_patch_prompter_forward.1} parent=5 // pred_region
        %s254 = ssub.s32 %s16, 2
        // Predicated region
        $region41: #{random_patch_prompter_forward.1} parent=39 // pred_check
          %p255 = pneg %p116
        $region42: #{random_patch_prompter_forward.1} parent=39 // pred_check_branch
          %257 = sbr.rel (%p255) target = $region44
        $region43: #{random_patch_prompter_forward.1} parent=39 // pred_region
          %s258 = sand.u32 %s101, 1
          %s259 = scalar_lea.sflag [#allocation6], %s258
          %s260 = sand.u32 %s101, 1
          %s261 = smul.addr %s260, 48
          %s262 = scalar_lea.vmem [#allocation7], %s261
          %264 = dma.done %s259, 768
        $region44: #{random_patch_prompter_forward.1} parent=39 // pred_fallthru
          _
      $region40: #{random_patch_prompter_forward.1} parent=5 // pred_fallthru
        _
    $region6: #{random_patch_prompter_forward.1} parent=1 // loop_footer
      %s20 = sadd.s32 1, %s16
    $region7: #{random_patch_prompter_forward.1} parent=1 // loop_footer_branch
      %15 = sbr.rel target = $region3
    $region8: #{random_patch_prompter_forward.1} parent=1 // loop_exit
      _
    %265 = vsyncpa [#allocation5], 1
    %s266 = scalar_lea.sflag [#allocation5], 1
    %267 = vsyncpa %s266, 1
    %268 = vsyncpa [#allocation6], 1
    %s269 = scalar_lea.sflag [#allocation6], 1
    %270 = vsyncpa %s269, 1

</llo_original>
